<compile_context>
chip_gen: v7x
topology: tpu7x:2x2x1
jax: 0.10.0
libtpu: 0.0.40
codegen_flags: <defaults>
</compile_context>

<pallas_src>
import functools

import numpy as np

import jax
import jax.numpy as jnp
from jax.experimental import pallas as pl
from jax.experimental.pallas import tpu as pltpu


def _moving_avg_kernel(w_ref, x_ref, o_ref, *, win, chunk_in_stride, pad,
                       seq_len, n_t):
    """One (batch, channel-tile, output-time-chunk) grid step.

    w_ref : (1, CH, win)  banded averaging weights for this time chunk (f32)
    x_ref : (1, L, TC)    full unpadded input sequence for this channel tile
    o_ref : (1, CH, TC)   output time chunk
    """
    if n_t == 1:
        xw = x_ref[0, 0:win, :]
    else:
        # Start of this chunk's source window inside the unpadded sequence
        # (must match the start used when building W in the wrapper).
        start = jnp.clip(pl.program_id(2) * chunk_in_stride - pad,
                         0, seq_len - win)
        xw = x_ref[0, pl.ds(start, win), :]
    acc = jnp.dot(w_ref[0], xw.astype(jnp.float32),
                  preferred_element_type=jnp.float32,
                  precision=jax.lax.Precision.HIGHEST)
    o_ref[0] = acc.astype(o_ref.dtype)


def _build_weights(L, L_out, K, stride, pad, CH, win, n_t):
    """W[t, i, j] = (1/K) * #{k : clip((t*CH+i)*stride + k - pad, 0, L-1) == start_t + j}."""
    W = np.zeros((n_t, CH, win), np.float32)
    taps = np.arange(K)
    for t in range(n_t):
        c0 = t * CH
        start = min(max(c0 * stride - pad, 0), L - win)
        rows = min(CH, L_out - c0)
        for i in range(rows):
            src = np.clip((c0 + i) * stride + taps - pad, 0, L - 1)
            np.add.at(W[t, i], src - start, 1.0)
    W *= np.float32(1.0 / K)
    return W


def moving_avg_pallas(x, kernel_size, stride):
    """Equivalent of moving_avg(kernel_size, stride).forward(x) for x: (B, L, C)."""
    B, L, C = x.shape
    K, S = int(kernel_size), int(stride)
    pad = (K - 1) // 2
    L_out = (L + 2 * pad - K) // S + 1
    xb = jnp.dtype(x.dtype).itemsize

    try:
        vcap = int(pltpu.get_tpu_info().vmem_capacity_bytes)
    except Exception:
        vcap = 64 * 1024 * 1024          # conservative (v7x per-core VMEM)
    budget = int(vcap * 0.45)

    def plan(tc):
        # Output-time chunk: keep the f32 result tile <= ~64 KiB (<= 16 vregs).
        if L_out * tc * 4 <= 64 * 1024 or L_out <= 8:
            ch = L_out
        else:
            ch = max(8, min(256, (16384 // max(tc, 1)) // 8 * 8))
        n_t = -(-L_out // ch)
        win = min(L, (ch - 1) * S + K)
        est = (2 * L * tc * xb            # double-buffered input block
               + 2 * ch * tc * xb         # double-buffered output block
               + 2 * ch * win * 4         # double-buffered weight block
               + (ch * tc + win * tc) * 4)  # f32 temporaries
        return tc, ch, n_t, win, est

    if C % 128 == 0:
        chosen = None
        for cand in (512, 256, 128):      # widest lane tile the VMEM budget allows
            if C % cand == 0:
                p = plan(cand)
                if p[-1] <= budget:
                    chosen = p
                    break
        if chosen is None:
            chosen = plan(128)
    else:
        # TODO(synk): for C < 128 and large B*C, fold batch onto the lane axis so
        # the output is lane-dense (avoids masked vst.msk on the last dim).
        chosen = plan(C)
    tc, CH, n_t, win, est = chosen
    n_c = C // tc

    # TODO(synk): for very long sequences the *input* time axis should also be
    # grid-tiled with a (K-1)*stride halo (pl.ANY + manual make_async_copy);
    # here only the output/W time axis is tiled and x stays resident per tile.
    vmem_limit = int(min(vcap, max(2 * est + (1 << 20), 16 * 1024 * 1024)))

    W = jnp.asarray(_build_weights(L, L_out, K, S, pad, CH, win, n_t))

    kernel = functools.partial(
        _moving_avg_kernel, win=win, chunk_in_stride=CH * S, pad=pad,
        seq_len=L, n_t=n_t)

    return pl.pallas_call(
        kernel,
        out_shape=jax.ShapeDtypeStruct((B, L_out, C), x.dtype),
        grid=(B, n_c, n_t),
        in_specs=[
            pl.BlockSpec((1, CH, win), lambda b, c, t: (t, 0, 0)),   # W chunk
            pl.BlockSpec((1, L, tc), lambda b, c, t: (b, 0, c)),     # x tile
        ],
        out_specs=pl.BlockSpec((1, CH, tc), lambda b, c, t: (b, t, c)),
        compiler_params=pltpu.CompilerParams(
            dimension_semantics=("parallel", "parallel", "arbitrary"),
            vmem_limit_bytes=vmem_limit),
    )(W, x)


def _reference(x, kernel_size, stride):
    # Pure-JAX reference matching the PyTorch semantics exactly.
    pad = (kernel_size - 1) // 2
    front = jnp.repeat(x[:, 0:1, :], pad, axis=1)
    end = jnp.repeat(x[:, -1:, :], pad, axis=1)
    xp = jnp.concatenate([front, x, end], axis=1)
    L_pad = xp.shape[1]
    L_out = (L_pad - kernel_size) // stride + 1
    outs = []
    for t in range(L_out):
        outs.append(jnp.mean(xp[:, t * stride: t * stride + kernel_size, :], axis=1))
    return jnp.stack(outs, axis=1).astype(x.dtype)


if __name__ == "__main__":
    # Case 1: module-typical small shape (C < 128 -> full-C lane block).
    key = jax.random.PRNGKey(0)
    B, L, C = 2, 16, 32
    kernel_size, stride = 5, 1
    x = jax.random.normal(key, (B, L, C), dtype=jnp.float32)

    out = jax.block_until_ready(moving_avg_pallas(x, kernel_size, stride))
    ref = _reference(x, kernel_size, stride)
    assert out.shape == ref.shape, (out.shape, ref.shape)
    assert jnp.allclose(out, ref, atol=1e-3, rtol=1e-3), "mismatch vs reference (case 1)"

    # Case 2: lane-dense channel tile (C=128), large kernel, stride > 1
    # (stride is baked into the banded weight matrix; no strided loads).
    key2 = jax.random.PRNGKey(0)
    B2, L2, C2 = 2, 43, 128
    k2, s2 = 25, 2
    x2 = jax.random.normal(key2, (B2, L2, C2), dtype=jnp.float32)

    out2 = jax.block_until_ready(moving_avg_pallas(x2, k2, s2))
    ref2 = _reference(x2, k2, s2)
    assert out2.shape == ref2.shape, (out2.shape, ref2.shape)
    assert jnp.allclose(out2, ref2, atol=1e-3, rtol=1e-3), "mismatch vs reference (case 2)"

    print("KERNEL_OK")
</pallas_src>

<mosaic_0001>
module attributes {stable_mosaic.version = 11 : i64} {
  func.func @_moving_avg_kernel(%arg0: i32, %arg1: i32, %arg2: i32, %arg3: memref<1x16x16xf32, #tpu.memory_space<vmem>>, %arg4: memref<1x16x32xf32, #tpu.memory_space<vmem>>, %arg5: memref<1x16x32xf32, #tpu.memory_space<vmem>>) attributes {dimension_semantics = [#tpu.dimension_semantics<parallel>, #tpu.dimension_semantics<parallel>, #tpu.dimension_semantics<arbitrary>], iteration_bounds = array<i64: 2, 1, 1>, scalar_prefetch = 0 : i64, scratch_operands = 0 : i64, tpu.core_type = #tpu.core_type<tc>, window_params = [{transform_indices = @transform_0, window_bounds = array<i64: 1, 16, 16>}, {transform_indices = @transform_1, window_bounds = array<i64: 1, 16, 32>}, {transform_indices = @transform_2, window_bounds = array<i64: 1, 16, 32>}]} {
    %c0 = arith.constant 0 : index
    %c0_0 = arith.constant 0 : index
    %c0_1 = arith.constant 0 : index
    %0 = vector.load %arg4[%c0, %c0_0, %c0_1] : memref<1x16x32xf32, #tpu.memory_space<vmem>>, vector<1x16x32xf32>
    %1 = vector.shape_cast %0 : vector<1x16x32xf32> to vector<16x32xf32>
    %c0_2 = arith.constant 0 : index
    %c0_3 = arith.constant 0 : index
    %c0_4 = arith.constant 0 : index
    %2 = vector.load %arg3[%c0_2, %c0_3, %c0_4] : memref<1x16x16xf32, #tpu.memory_space<vmem>>, vector<1x16x16xf32>
    %3 = vector.shape_cast %2 : vector<1x16x16xf32> to vector<16x16xf32>
    %cst = arith.constant dense<0.000000e+00> : vector<16x32xf32>
    %4 = tpu.matmul %3, %1, %cst {dimension_numbers = #tpu.dot_dimension_numbers<[1], [0], [0], [1], [0, 0, 1, 1], [], []>, precision = #tpu.contract_precision<fp32>} : vector<16x16xf32>, vector<16x32xf32>, vector<16x32xf32> -> vector<16x32xf32>
    %c0_5 = arith.constant 0 : index
    %c0_6 = arith.constant 0 : index
    %c0_7 = arith.constant 0 : index
    %5 = vector.load %arg5[%c0_5, %c0_6, %c0_7] : memref<1x16x32xf32, #tpu.memory_space<vmem>>, vector<1x16x32xf32>
    %6 = vector.shape_cast %5 : vector<1x16x32xf32> to vector<16x32xf32>
    %7 = vector.shape_cast %4 : vector<16x32xf32> to vector<1x16x32xf32>
    tpu.vector_store %arg5[%c0_5, %c0_6, %c0_7], %7 {strides = array<i32>} : memref<1x16x32xf32, #tpu.memory_space<vmem>>, vector<1x16x32xf32>,
    return
  }
  func.func @transform_0(%arg0: i32, %arg1: i32, %arg2: i32) -> (i32, i32, i32) {
    %c0_i32 = arith.constant 0 : i32
    %c0_i32_0 = arith.constant 0 : i32
    %c0_i32_1 = arith.constant 0 : i32
    return %arg2, %c0_i32, %c0_i32_0 : i32, i32, i32
  }
  func.func @transform_1(%arg0: i32, %arg1: i32, %arg2: i32) -> (i32, i32, i32) {
    %c0_i32 = arith.constant 0 : i32
    %c0_i32_0 = arith.constant 0 : i32
    return %arg0, %c0_i32, %arg1 : i32, i32, i32
  }
  func.func @transform_2(%arg0: i32, %arg1: i32, %arg2: i32) -> (i32, i32, i32) {
    %c0_i32 = arith.constant 0 : i32
    return %arg0, %arg2, %arg1 : i32, i32, i32
  }
}

</mosaic_0001>

<llo_original>
// kernel: tpu_custom_call.1
$region0: #{tpu_custom_call.1}
  #allocation0 [shape = 'u32[]', space=smem, size = 0x4, offset = 0x4, fixed_abs, tag = 'smem constant byte address 0x4 - core index']
  #allocation1 [shape = 'u32[144,128]{1,0:T(1,128)}', space=vmem, size = 0x12000, scoped, tag = 'internal scratch']
  %s0 = inlined_call_operand.hbm [shape: f32[1,16,16], index: 0, kind: input, shape index: {}]
  %s1 = inlined_call_operand.hbm [shape: f32[2,16,32], index: 1, kind: input, shape index: {}]
  %s2 = inlined_call_operand.hbm [shape: f32[2,16,32], index: 2, kind: output, shape index: {}]
  %s3 = sld [smem:[#allocation0]]
  $region49: #{tpu_custom_call.1} parent=0
    _
  %s5 = ssub.s32 1, %s3
  %s6 = scalar_select 0, %s5, %s3
  $region1: #{tpu_custom_call.1} parent=0
    #allocation2 [shape = 'u8[8192]{0}', space=vmem, size = 0x2000, scoped, tag = 'input window, operand 0, single buffered']
    #allocation3 [shape = 's32[2]{0}', space=sflag, size = 0x8, scoped, tag = 'scoped memory for tpu_custom_call.1']
    #allocation4 [shape = 's32[2]{0}', space=sflag, size = 0x8, scoped, tag = 'scoped memory for tpu_custom_call.1']
    #allocation5 [shape = 'u8[16384]{0}', space=vmem, size = 0x4000, scoped, tag = 'input window, operand 1']
    #allocation6 [shape = 's32[2]{0}', space=sflag, size = 0x8, scoped, tag = 'scoped memory for tpu_custom_call.1']
    #allocation7 [shape = 'u8[16384]{0}', space=vmem, size = 0x4000, scoped, tag = 'output window, operand 0']
    %7 = vsyncpa [#allocation3], 0
    %8 = vsyncpa [#allocation6], 0
    %s9 = scalar_lea.sflag [#allocation6], 1
    %10 = vsyncpa %s9, 0
    %11 = vsyncpa [#allocation4], 0
    %s12 = scalar_lea.sflag [#allocation4], 1
    %13 = vsyncpa %s12, 0
    loop: start=0, step=1, limit=4
    $region2: #{tpu_custom_call.1} parent=1 // loop_pre_header
      _
    $region3: #{tpu_custom_call.1} parent=1 // loop_header
      %s15 = sphi 0, %s19
      %p16 = scmp.ge.s32.totalorder %s15, 4
      %s22 = sphi 0, %s41
      %s23 = sphi 0, %s37
      %s24 = sphi 0, %s33
      %s25 = sphi 0, %s22
      %s26 = sphi 0, %s23
      %s27 = sphi 0, %s24
      %s28 = sphi 0, %s25
      %s29 = sphi 0, %s26
      %s30 = sphi 0, %s27
      %s44 = sphi 0, %s46
      %s47 = sphi 0, %s44
      %s48 = sphi 0, %s47
      %s64 = sphi 0, %s48
      %s72 = sphi 0, %s74
      %s75 = sphi 0, %s72
      %s76 = sphi 0, %s75
      %s92 = sphi 0, %s76
      %s102 = sphi 0, %s104
      %s105 = sphi 0, %s102
      %s106 = sphi 0, %s105
      %s122 = sphi 0, %s106
    $region4: #{tpu_custom_call.1} parent=1 // loop_header_branch
      %18 = sbr.rel (%p16) target = $region8
    $region5: #{tpu_custom_call.1} parent=1 // loop_body
      %s20 = ssub.s32 %s15, 1
      %s21 = ssub.s32 %s15, 2
      %s31 = sadd.s32 1, %s24
      %p32 = scmp.ge.s32.totalorder %s31, 1
      %s33 = scalar_select %p32, 0, %s31
      %s34 = sadd.s32 1, %s23
      %s35 = scalar_select %p32, %s34, %s23
      %p36 = scmp.ge.s32.totalorder %s35, 1
      %s37 = scalar_select %p36, 0, %s35
      %s38 = sadd.s32 1, %s22
      %s39 = scalar_select %p36, %s38, %s22
      %p40 = scmp.ge.s32.totalorder %s39, 2
      %s41 = scalar_select %p40, 0, %s39
      %s42 = ssub.s32 %s24, %s33
      %p43 = scmp.eq.s32.totalorder %s42, 0
      %s45 = sadd.s32 %s44, 1
      %s46 = scalar_select %p43, %s44, %s45
      %p49 = pneg %p43
      %p50 = scmp.eq.s32.totalorder %s15, 1
      %p51 = por %p49, %p50
      %p52 = scmp.ne.s32.totalorder %s44, %s47
      %p53 = scmp.eq.s32.totalorder %s15, 0
      %p54 = por %p52, %p53
      %p55 = scmp.ne.s32.totalorder %s44, %s47
      %p56 = scmp.eq.s32.totalorder %s20, 1
      %p57 = por %p55, %p56
      %p58 = scmp.ne.s32.totalorder %s47, %s48
      %p59 = scmp.eq.s32.totalorder %s20, 0
      %p60 = por %p58, %p59
      %p61 = scmp.ne.s32.totalorder %s47, %s48
      %p62 = scmp.eq.s32.totalorder %s21, 1
      %p63 = por %p61, %p62
      %p65 = scmp.ne.s32.totalorder %s48, %s64
      %p66 = scmp.eq.s32.totalorder %s21, 0
      %p67 = por %p65, %p66
      %s68 = ssub.s32 %s22, %s41
      %s69 = ssub.s32 %s23, %s37
      %s70 = sor.u32 %s68, %s69
      %p71 = scmp.eq.s32.totalorder %s70, 0
      %s73 = sadd.s32 %s72, 1
      %s74 = scalar_select %p71, %s72, %s73
      %p77 = pneg %p71
      %p78 = scmp.eq.s32.totalorder %s15, 1
      %p79 = por %p77, %p78
      %p80 = scmp.ne.s32.totalorder %s72, %s75
      %p81 = scmp.eq.s32.totalorder %s15, 0
      %p82 = por %p80, %p81
      %p83 = scmp.ne.s32.totalorder %s72, %s75
      %p84 = scmp.eq.s32.totalorder %s20, 1
      %p85 = por %p83, %p84
      %p86 = scmp.ne.s32.totalorder %s75, %s76
      %p87 = scmp.eq.s32.totalorder %s20, 0
      %p88 = por %p86, %p87
      %p89 = scmp.ne.s32.totalorder %s75, %s76
      %p90 = scmp.eq.s32.totalorder %s21, 1
      %p91 = por %p89, %p90
      %p93 = scmp.ne.s32.totalorder %s76, %s92
      %p94 = scmp.eq.s32.totalorder %s21, 0
      %p95 = por %p93, %p94
      %s96 = ssub.s32 %s22, %s41
      %s97 = ssub.s32 %s24, %s33
      %s98 = sor.u32 %s96, %s97
      %s99 = ssub.s32 %s23, %s37
      %s100 = sor.u32 %s98, %s99
      %p101 = scmp.eq.s32.totalorder %s100, 0
      %s103 = sadd.s32 %s102, 1
      %s104 = scalar_select %p101, %s102, %s103
      %p107 = pneg %p101
      %p108 = scmp.eq.s32.totalorder %s15, 1
      %p109 = por %p107, %p108
      %p110 = scmp.ne.s32.totalorder %s102, %s105
      %p111 = scmp.eq.s32.totalorder %s15, 0
      %p112 = por %p110, %p111
      %p113 = scmp.ne.s32.totalorder %s102, %s105
      %p114 = scmp.eq.s32.totalorder %s20, 1
      %p115 = por %p113, %p114
      %p116 = scmp.ne.s32.totalorder %s105, %s106
      %p117 = scmp.eq.s32.totalorder %s20, 0
      %p118 = por %p116, %p117
      %p119 = scmp.ne.s32.totalorder %s105, %s106
      %p120 = scmp.eq.s32.totalorder %s21, 1
      %p121 = por %p119, %p120
      %p123 = scmp.ne.s32.totalorder %s106, %s122
      %p124 = scmp.eq.s32.totalorder %s21, 0
      %p125 = por %p123, %p124
      %p126 = scmp.le.s32.totalorder 1, %s15
      %p127 = scmp.lt.s32.totalorder %s15, 3
      %p128 = pnand %p126, %p127
      %p129 = pneg %p128
      // Predicated region
      $region9: #{tpu_custom_call.1} parent=5 // pred_check
        _
      $region10: #{tpu_custom_call.1} parent=5 // pred_check_branch
        %131 = sbr.rel (%p128) target = $region12
      $region11: #{tpu_custom_call.1} parent=5 // pred_region
        %s132 = ssub.s32 %s15, 1
        // Predicated region
        $region13: #{tpu_custom_call.1} parent=11 // pred_check
          %p133 = pneg %p60
        $region14: #{tpu_custom_call.1} parent=11 // pred_check_branch
          %135 = sbr.rel (%p133) target = $region16
        $region15: #{tpu_custom_call.1} parent=11 // pred_region
          %s137 = ssub.s32 256, 256
          %138 = vsyncadd [#allocation3], %s137
          %s139 = smul.addr %s27, 2
          %s140 = smul.addr %s139, 128
          %s141 = scalar_lea.hbm %s0, %s140
          %s142 = sshll.u32 [#allocation2], 4
          %s143 = int_to_ptr.vmem [resolvable:$true] %s142
          %148 = dma.hbm_to_vmem [thread:$0]  %s141, 256, %s143, [#allocation3], 128, 128, 8
        $region16: #{tpu_custom_call.1} parent=11 // pred_fallthru
          _
      $region12: #{tpu_custom_call.1} parent=5 // pred_fallthru
        _
      %p149 = scmp.lt.s32.totalorder %s15, 2
      // Predicated region
      $region17: #{tpu_custom_call.1} parent=5 // pred_check
        %p150 = pneg %p149
      $region18: #{tpu_custom_call.1} parent=5 // pred_check_branch
        %152 = sbr.rel (%p150) target = $region20
      $region19: #{tpu_custom_call.1} parent=5 // pred_region
        // Predicated region
        $region21: #{tpu_custom_call.1} parent=19 // pred_check
          %p153 = pneg %p82
        $region22: #{tpu_custom_call.1} parent=19 // pred_check_branch
          %155 = sbr.rel (%p153) target = $region24
        $region23: #{tpu_custom_call.1} parent=19 // pred_region
          %s156 = sand.u32 %s72, 1
          %s157 = scalar_lea.sflag [#allocation6], %s156
          %s158 = sand.u32 %s72, 1
          %s159 = smul.addr %s158, 16
          %s160 = scalar_lea.vmem [#allocation5], %s159
          %s162 = ssub.s32 256, 256
          %163 = vsyncadd %s157, %s162
          %s164 = smul.addr %s22, 2
          %s165 = sadd.s32 %s23, %s164
          %s166 = smul.addr %s165, 128
          %s167 = scalar_lea.hbm %s1, %s166
          %s168 = sshll.u32 %s160, 4
          %s169 = int_to_ptr.vmem [resolvable:$true] %s168
          %174 = dma.hbm_to_vmem [thread:$0]  %s167, 256, %s169, %s157, 128, 128, 8
        $region24: #{tpu_custom_call.1} parent=19 // pred_fallthru
          _
      $region20: #{tpu_custom_call.1} parent=5 // pred_fallthru
        _
      %p175 = scmp.le.s32.totalorder 1, %s15
      %p176 = scmp.lt.s32.totalorder %s15, 3
      %p177 = pnand %p175, %p176
      %p178 = pneg %p177
      // Predicated region
      $region25: #{tpu_custom_call.1} parent=5 // pred_check
        _
      $region26: #{tpu_custom_call.1} parent=5 // pred_check_branch
        %180 = sbr.rel (%p177) target = $region28
      $region27: #{tpu_custom_call.1} parent=5 // pred_region
        %s181 = ssub.s32 %s15, 1
        // Predicated region
        $region29: #{tpu_custom_call.1} parent=27 // pred_check
          %p182 = pneg %p60
        $region30: #{tpu_custom_call.1} parent=27 // pred_check_branch
          %184 = sbr.rel (%p182) target = $region32
        $region31: #{tpu_custom_call.1} parent=27 // pred_region
          %185 = dma.done [#allocation3], 256
        $region32: #{tpu_custom_call.1} parent=27 // pred_fallthru
          _
        %s186 = sand.u32 %s75, 1
        %s187 = scalar_lea.sflag [#allocation6], %s186
        %s188 = sand.u32 %s75, 1
        %s189 = smul.addr %s188, 16
        %s190 = scalar_lea.vmem [#allocation5], %s189
        // Predicated region
        $region33: #{tpu_custom_call.1} parent=27 // pred_check
          %p191 = pneg %p88
        $region34: #{tpu_custom_call.1} parent=27 // pred_check_branch
          %193 = sbr.rel (%p191) target = $region36
        $region35: #{tpu_custom_call.1} parent=27 // pred_region
          %194 = dma.done %s187, 256
        $region36: #{tpu_custom_call.1} parent=27 // pred_fallthru
          _
        %p195 = pneg %p60
        %p196 = pneg %p57
        %s197 = sand.u32 %s75, 1
        %s198 = scalar_lea.sflag [#allocation6], %s197
        %s199 = sand.u32 %s75, 1
        %s200 = smul.addr %s199, 16
        %s201 = scalar_lea.vmem [#allocation5], %s200
        %p202 = pneg %p88
        %p203 = pneg %p85
        %p204 = pneg %p118
        %p205 = pneg %p115
        %s206 = sand.u32 %s105, 1
        %s207 = scalar_lea.sflag [#allocation4], %s206
        %s208 = sand.u32 %s105, 1
        %s209 = smul.addr %s208, 16
        %s210 = scalar_lea.vmem [#allocation7], %s209
        %s211 = smul.u32 2, %s27
        %v212 = vld [vmem:[%s190] sm:$0xff]
        %v213 = vld [vmem:[%s190 + $0x8] sm:$0xff]
        %v214 = vld [vmem:[#allocation2] sm:$0xff]
        %v215 = vld [vmem:[#allocation2 + $0x8] sm:$0xff]
        %vm216 = vcmask 130048
        %v218 = vsel %vm216, %v214, 0
        %v221 = vsel %vm216, %v215, 0
        %223 = vmatprep.subr.mxu0 0.0
        %v224 = vand.u32 %v212, 4294901760
        %225 = vmatpush1.msra.mxu0 %v224
        %226 = vmatprep.subr.mxu0 0.0
        %v227 = vand.u32 %v213, 4294901760
        %228 = vmatpush1.msra.mxu0 %v227
        %229 = vmatprep.subr.mxu0 0.0
        %230 = vmatpush1.msra.mxu0 0.0
        %231 = vmatprep.subr.mxu0 0.0
        %232 = vmatpush1.msra.mxu0 0.0
        %233 = vmatprep.subr.mxu0 0.0
        %234 = vmatpush1.msra.mxu0 0.0
        %235 = vmatprep.subr.mxu0 0.0
        %236 = vmatpush1.msra.mxu0 0.0
        %237 = vmatprep.subr.mxu0 0.0
        %238 = vmatpush1.msra.mxu0 0.0
        %239 = vmatprep.subr.mxu0 0.0
        %240 = vmatpush1.msra.mxu0 0.0
        %241 = vmatprep.subr.mxu0 0.0
        %242 = vmatpush1.msra.mxu0 0.0
        %243 = vmatprep.subr.mxu0 0.0
        %244 = vmatpush1.msra.mxu0 0.0
        %245 = vmatprep.subr.mxu0 0.0
        %246 = vmatpush1.msra.mxu0 0.0
        %247 = vmatprep.subr.mxu0 0.0
        %248 = vmatpush1.msra.mxu0 0.0
        %249 = vmatprep.subr.mxu0 0.0
        %250 = vmatpush1.msra.mxu0 0.0
        %251 = vmatprep.subr.mxu0 0.0
        %252 = vmatpush1.msra.mxu0 0.0
        %253 = vmatprep.subr.mxu0 0.0
        %254 = vmatpush1.msra.mxu0 0.0
        %255 = vmatprep.subr.mxu0 0.0
        %256 = vmatpush1.msra.mxu0 0.0
        %257 = vmatprep.subr.mxu0 0.0
        %258 = vmatpush1.msra.mxu0 0.0
        %259 = vmatprep.subr.mxu0 0.0
        %260 = vmatpush1.msra.mxu0 0.0
        %261 = vmatprep.subr.mxu0 0.0
        %262 = vmatpush1.msra.mxu0 0.0
        %263 = vmatprep.subr.mxu0 0.0
        %264 = vmatpush1.msra.mxu0 0.0
        %265 = vmatprep.subr.mxu0 0.0
        %266 = vmatpush1.msra.mxu0 0.0
        %267 = vmatprep.subr.mxu0 0.0
        %268 = vmatpush1.msra.mxu0 0.0
        %269 = vmatprep.subr.mxu0 0.0
        %270 = vmatpush1.msra.mxu0 0.0
        %271 = vmatprep.subr.mxu0 0.0
        %272 = vmatpush1.msra.mxu0 0.0
        %273 = vmatprep.subr.mxu0 0.0
        %274 = vmatpush1.msra.mxu0 0.0
        %275 = vmatprep.subr.mxu0 0.0
        %276 = vmatpush1.msra.mxu0 0.0
        %277 = vmatprep.subr.mxu0 0.0
        %278 = vmatpush1.msra.mxu0 0.0
        %279 = vmatprep.subr.mxu0 0.0
        %280 = vmatpush1.msra.mxu0 0.0
        %281 = vmatprep.subr.mxu0 0.0
        %282 = vmatpush1.msra.mxu0 0.0
        %283 = vmatprep.subr.mxu0 0.0
        %284 = vmatpush1.msra.mxu0 0.0
        %285 = vmatprep.subr.mxu0 0.0
        %286 = vmatpush1.msra.mxu0 0.0
        %287 = vmatprep.subr.mxu0 0.0
        %288 = vmatpush1.msra.mxu0 0.0
        %289 = vmatprep.mubr.f32.mxu0 0.0
        %v290 = vand.u32 %v218, 4294901760
        %v291 = vsub.f32 %v218, %v290
        %v292 = vand.u32 %v291, 4294901760
        %v293 = vsub.f32 %v291, %v292
        %v294 = vand.u32 %v293, 4294901760
        %295 = vmatmul.mubr.f32.gmra.mrb[0].mxu0 %v294
        %v296 = vpop.f32.mrb[0].mxu0
        %v297 = vadd.f32 0.0, %v296
        %v298 = vpop.f32.mrb[0].mxu0
        %299 = vmatprep.mubr.f32.mxu0 0.0
        %v300 = vand.u32 %v221, 4294901760
        %v301 = vsub.f32 %v221, %v300
        %v302 = vand.u32 %v301, 4294901760
        %v303 = vsub.f32 %v301, %v302
        %v304 = vand.u32 %v303, 4294901760
        %305 = vmatmul.mubr.f32.gmra.mrb[0].mxu0 %v304
        %v306 = vpop.f32.mrb[0].mxu0
        %v307 = vadd.f32 0.0, %v306
        %v308 = vpop.f32.mrb[0].mxu0
        %309 = vdwg.mxu0
        %310 = vmatprep.subr.mxu0 0.0
        %v311 = vand.u32 %v212, 4294901760
        %v312 = vsub.f32 %v212, %v311
        %v313 = vand.u32 %v312, 4294901760
        %v314 = vsub.f32 %v312, %v313
        %v315 = vand.u32 %v314, 4294901760
        %316 = vmatpush1.msra.mxu0 %v315
        %317 = vmatprep.subr.mxu0 0.0
        %v318 = vand.u32 %v213, 4294901760
        %v319 = vsub.f32 %v213, %v318
        %v320 = vand.u32 %v319, 4294901760
        %v321 = vsub.f32 %v319, %v320
        %v322 = vand.u32 %v321, 4294901760
        %323 = vmatpush1.msra.mxu0 %v322
        %324 = vmatprep.subr.mxu0 0.0
        %325 = vmatpush1.msra.mxu0 0.0
        %326 = vmatprep.subr.mxu0 0.0
        %327 = vmatpush1.msra.mxu0 0.0
        %328 = vmatprep.subr.mxu0 0.0
        %329 = vmatpush1.msra.mxu0 0.0
        %330 = vmatprep.subr.mxu0 0.0
        %331 = vmatpush1.msra.mxu0 0.0
        %332 = vmatprep.subr.mxu0 0.0
        %333 = vmatpush1.msra.mxu0 0.0
        %334 = vmatprep.subr.mxu0 0.0
        %335 = vmatpush1.msra.mxu0 0.0
        %336 = vmatprep.subr.mxu0 0.0
        %337 = vmatpush1.msra.mxu0 0.0
        %338 = vmatprep.subr.mxu0 0.0
        %339 = vmatpush1.msra.mxu0 0.0
        %340 = vmatprep.subr.mxu0 0.0
        %341 = vmatpush1.msra.mxu0 0.0
        %342 = vmatprep.subr.mxu0 0.0
        %343 = vmatpush1.msra.mxu0 0.0
        %344 = vmatprep.subr.mxu0 0.0
        %345 = vmatpush1.msra.mxu0 0.0
        %346 = vmatprep.subr.mxu0 0.0
        %347 = vmatpush1.msra.mxu0 0.0
        %348 = vmatprep.subr.mxu0 0.0
        %349 = vmatpush1.msra.mxu0 0.0
        %350 = vmatprep.subr.mxu0 0.0
        %351 = vmatpush1.msra.mxu0 0.0
        %352 = vmatprep.subr.mxu0 0.0
        %353 = vmatpush1.msra.mxu0 0.0
        %354 = vmatprep.subr.mxu0 0.0
        %355 = vmatpush1.msra.mxu0 0.0
        %356 = vmatprep.subr.mxu0 0.0
        %357 = vmatpush1.msra.mxu0 0.0
        %358 = vmatprep.subr.mxu0 0.0
        %359 = vmatpush1.msra.mxu0 0.0
        %360 = vmatprep.subr.mxu0 0.0
        %361 = vmatpush1.msra.mxu0 0.0
        %362 = vmatprep.subr.mxu0 0.0
        %363 = vmatpush1.msra.mxu0 0.0
        %364 = vmatprep.subr.mxu0 0.0
        %365 = vmatpush1.msra.mxu0 0.0
        %366 = vmatprep.subr.mxu0 0.0
        %367 = vmatpush1.msra.mxu0 0.0
        %368 = vmatprep.subr.mxu0 0.0
        %369 = vmatpush1.msra.mxu0 0.0
        %370 = vmatprep.subr.mxu0 0.0
        %371 = vmatpush1.msra.mxu0 0.0
        %372 = vmatprep.subr.mxu0 0.0
        %373 = vmatpush1.msra.mxu0 0.0
        %374 = vmatprep.subr.mxu0 0.0
        %375 = vmatpush1.msra.mxu0 0.0
        %376 = vmatprep.subr.mxu0 0.0
        %377 = vmatpush1.msra.mxu0 0.0
        %378 = vmatprep.subr.mxu0 0.0
        %379 = vmatpush1.msra.mxu0 0.0
        %380 = vmatprep.subr.mxu0 0.0
        %381 = vmatpush1.msra.mxu0 0.0
        %382 = vmatprep.subr.mxu0 0.0
        %383 = vmatpush1.msra.mxu0 0.0
        %384 = vmatprep.mubr.f32.mxu0 0.0
        %v385 = vand.u32 %v218, 4294901760
        %386 = vmatmul.mubr.f32.gmra.mrb[0].mxu0 %v385
        %v387 = vpop.f32.mrb[0].mxu0
        %v388 = vadd.f32 %v297, %v387
        %v389 = vpop.f32.mrb[0].mxu0
        %390 = vmatprep.mubr.f32.mxu0 0.0
        %v391 = vand.u32 %v221, 4294901760
        %392 = vmatmul.mubr.f32.gmra.mrb[0].mxu0 %v391
        %v393 = vpop.f32.mrb[0].mxu0
        %v394 = vadd.f32 %v307, %v393
        %v395 = vpop.f32.mrb[0].mxu0
        %396 = vdwg.mxu0
        %397 = vmatprep.subr.mxu0 0.0
        %v398 = vand.u32 %v212, 4294901760
        %v399 = vsub.f32 %v212, %v398
        %400 = vmatpush1.msra.mxu0 %v399
        %401 = vmatprep.subr.mxu0 0.0
        %v402 = vand.u32 %v213, 4294901760
        %v403 = vsub.f32 %v213, %v402
        %404 = vmatpush1.msra.mxu0 %v403
        %405 = vmatprep.subr.mxu0 0.0
        %406 = vmatpush1.msra.mxu0 0.0
        %407 = vmatprep.subr.mxu0 0.0
        %408 = vmatpush1.msra.mxu0 0.0
        %409 = vmatprep.subr.mxu0 0.0
        %410 = vmatpush1.msra.mxu0 0.0
        %411 = vmatprep.subr.mxu0 0.0
        %412 = vmatpush1.msra.mxu0 0.0
        %413 = vmatprep.subr.mxu0 0.0
        %414 = vmatpush1.msra.mxu0 0.0
        %415 = vmatprep.subr.mxu0 0.0
        %416 = vmatpush1.msra.mxu0 0.0
        %417 = vmatprep.subr.mxu0 0.0
        %418 = vmatpush1.msra.mxu0 0.0
        %419 = vmatprep.subr.mxu0 0.0
        %420 = vmatpush1.msra.mxu0 0.0
        %421 = vmatprep.subr.mxu0 0.0
        %422 = vmatpush1.msra.mxu0 0.0
        %423 = vmatprep.subr.mxu0 0.0
        %424 = vmatpush1.msra.mxu0 0.0
        %425 = vmatprep.subr.mxu0 0.0
        %426 = vmatpush1.msra.mxu0 0.0
        %427 = vmatprep.subr.mxu0 0.0
        %428 = vmatpush1.msra.mxu0 0.0
        %429 = vmatprep.subr.mxu0 0.0
        %430 = vmatpush1.msra.mxu0 0.0
        %431 = vmatprep.subr.mxu0 0.0
        %432 = vmatpush1.msra.mxu0 0.0
        %433 = vmatprep.subr.mxu0 0.0
        %434 = vmatpush1.msra.mxu0 0.0
        %435 = vmatprep.subr.mxu0 0.0
        %436 = vmatpush1.msra.mxu0 0.0
        %437 = vmatprep.subr.mxu0 0.0
        %438 = vmatpush1.msra.mxu0 0.0
        %439 = vmatprep.subr.mxu0 0.0
        %440 = vmatpush1.msra.mxu0 0.0
        %441 = vmatprep.subr.mxu0 0.0
        %442 = vmatpush1.msra.mxu0 0.0
        %443 = vmatprep.subr.mxu0 0.0
        %444 = vmatpush1.msra.mxu0 0.0
        %445 = vmatprep.subr.mxu0 0.0
        %446 = vmatpush1.msra.mxu0 0.0
        %447 = vmatprep.subr.mxu0 0.0
        %448 = vmatpush1.msra.mxu0 0.0
        %449 = vmatprep.subr.mxu0 0.0
        %450 = vmatpush1.msra.mxu0 0.0
        %451 = vmatprep.subr.mxu0 0.0
        %452 = vmatpush1.msra.mxu0 0.0
        %453 = vmatprep.subr.mxu0 0.0
        %454 = vmatpush1.msra.mxu0 0.0
        %455 = vmatprep.subr.mxu0 0.0
        %456 = vmatpush1.msra.mxu0 0.0
        %457 = vmatprep.subr.mxu0 0.0
        %458 = vmatpush1.msra.mxu0 0.0
        %459 = vmatprep.subr.mxu0 0.0
        %460 = vmatpush1.msra.mxu0 0.0
        %461 = vmatprep.subr.mxu0 0.0
        %462 = vmatpush1.msra.mxu0 0.0
        %463 = vmatprep.subr.mxu0 0.0
        %464 = vmatpush1.msra.mxu0 0.0
        %465 = vmatprep.mubr.f32.mxu0 0.0
        %v466 = vand.u32 %v218, 4294901760
        %v467 = vsub.f32 %v218, %v466
        %468 = vmatmul.mubr.f32.gmra.mrb[0].mxu0 %v467
        %v469 = vpop.f32.mrb[0].mxu0
        %v470 = vadd.f32 %v388, %v469
        %v471 = vpop.f32.mrb[0].mxu0
        %472 = vmatprep.mubr.f32.mxu0 0.0
        %v473 = vand.u32 %v221, 4294901760
        %v474 = vsub.f32 %v221, %v473
        %475 = vmatmul.mubr.f32.gmra.mrb[0].mxu0 %v474
        %v476 = vpop.f32.mrb[0].mxu0
        %v477 = vadd.f32 %v394, %v476
        %v478 = vpop.f32.mrb[0].mxu0
        %479 = vdwg.mxu0
        %480 = vmatprep.subr.mxu0 0.0
        %v481 = vand.u32 %v212, 4294901760
        %482 = vmatpush1.msra.mxu0 %v481
        %483 = vmatprep.subr.mxu0 0.0
        %v484 = vand.u32 %v213, 4294901760
        %485 = vmatpush1.msra.mxu0 %v484
        %486 = vmatprep.subr.mxu0 0.0
        %487 = vmatpush1.msra.mxu0 0.0
        %488 = vmatprep.subr.mxu0 0.0
        %489 = vmatpush1.msra.mxu0 0.0
        %490 = vmatprep.subr.mxu0 0.0
        %491 = vmatpush1.msra.mxu0 0.0
        %492 = vmatprep.subr.mxu0 0.0
        %493 = vmatpush1.msra.mxu0 0.0
        %494 = vmatprep.subr.mxu0 0.0
        %495 = vmatpush1.msra.mxu0 0.0
        %496 = vmatprep.subr.mxu0 0.0
        %497 = vmatpush1.msra.mxu0 0.0
        %498 = vmatprep.subr.mxu0 0.0
        %499 = vmatpush1.msra.mxu0 0.0
        %500 = vmatprep.subr.mxu0 0.0
        %501 = vmatpush1.msra.mxu0 0.0
        %502 = vmatprep.subr.mxu0 0.0
        %503 = vmatpush1.msra.mxu0 0.0
        %504 = vmatprep.subr.mxu0 0.0
        %505 = vmatpush1.msra.mxu0 0.0
        %506 = vmatprep.subr.mxu0 0.0
        %507 = vmatpush1.msra.mxu0 0.0
        %508 = vmatprep.subr.mxu0 0.0
        %509 = vmatpush1.msra.mxu0 0.0
        %510 = vmatprep.subr.mxu0 0.0
        %511 = vmatpush1.msra.mxu0 0.0
        %512 = vmatprep.subr.mxu0 0.0
        %513 = vmatpush1.msra.mxu0 0.0
        %514 = vmatprep.subr.mxu0 0.0
        %515 = vmatpush1.msra.mxu0 0.0
        %516 = vmatprep.subr.mxu0 0.0
        %517 = vmatpush1.msra.mxu0 0.0
        %518 = vmatprep.subr.mxu0 0.0
        %519 = vmatpush1.msra.mxu0 0.0
        %520 = vmatprep.subr.mxu0 0.0
        %521 = vmatpush1.msra.mxu0 0.0
        %522 = vmatprep.subr.mxu0 0.0
        %523 = vmatpush1.msra.mxu0 0.0
        %524 = vmatprep.subr.mxu0 0.0
        %525 = vmatpush1.msra.mxu0 0.0
        %526 = vmatprep.subr.mxu0 0.0
        %527 = vmatpush1.msra.mxu0 0.0
        %528 = vmatprep.subr.mxu0 0.0
        %529 = vmatpush1.msra.mxu0 0.0
        %530 = vmatprep.subr.mxu0 0.0
        %531 = vmatpush1.msra.mxu0 0.0
        %532 = vmatprep.subr.mxu0 0.0
        %533 = vmatpush1.msra.mxu0 0.0
        %534 = vmatprep.subr.mxu0 0.0
        %535 = vmatpush1.msra.mxu0 0.0
        %536 = vmatprep.subr.mxu0 0.0
        %537 = vmatpush1.msra.mxu0 0.0
        %538 = vmatprep.subr.mxu0 0.0
        %539 = vmatpush1.msra.mxu0 0.0
        %540 = vmatprep.subr.mxu0 0.0
        %541 = vmatpush1.msra.mxu0 0.0
        %542 = vmatprep.subr.mxu0 0.0
        %543 = vmatpush1.msra.mxu0 0.0
        %544 = vmatprep.subr.mxu0 0.0
        %545 = vmatpush1.msra.mxu0 0.0
        %546 = vmatprep.mubr.f32.mxu0 0.0
        %v547 = vand.u32 %v218, 4294901760
        %v548 = vsub.f32 %v218, %v547
        %v549 = vand.u32 %v548, 4294901760
        %550 = vmatmul.mubr.f32.gmra.mrb[0].mxu0 %v549
        %v551 = vpop.f32.mrb[0].mxu0
        %v552 = vadd.f32 %v470, %v551
        %v553 = vpop.f32.mrb[0].mxu0
        %554 = vmatprep.mubr.f32.mxu0 0.0
        %v555 = vand.u32 %v221, 4294901760
        %v556 = vsub.f32 %v221, %v555
        %v557 = vand.u32 %v556, 4294901760
        %558 = vmatmul.mubr.f32.gmra.mrb[0].mxu0 %v557
        %v559 = vpop.f32.mrb[0].mxu0
        %v560 = vadd.f32 %v477, %v559
        %v561 = vpop.f32.mrb[0].mxu0
        %562 = vdwg.mxu0
        %563 = vmatprep.subr.mxu0 0.0
        %v564 = vand.u32 %v212, 4294901760
        %v565 = vsub.f32 %v212, %v564
        %v566 = vand.u32 %v565, 4294901760
        %567 = vmatpush1.msra.mxu0 %v566
        %568 = vmatprep.subr.mxu0 0.0
        %v569 = vand.u32 %v213, 4294901760
        %v570 = vsub.f32 %v213, %v569
        %v571 = vand.u32 %v570, 4294901760
        %572 = vmatpush1.msra.mxu0 %v571
        %573 = vmatprep.subr.mxu0 0.0
        %574 = vmatpush1.msra.mxu0 0.0
        %575 = vmatprep.subr.mxu0 0.0
        %576 = vmatpush1.msra.mxu0 0.0
        %577 = vmatprep.subr.mxu0 0.0
        %578 = vmatpush1.msra.mxu0 0.0
        %579 = vmatprep.subr.mxu0 0.0
        %580 = vmatpush1.msra.mxu0 0.0
        %581 = vmatprep.subr.mxu0 0.0
        %582 = vmatpush1.msra.mxu0 0.0
        %583 = vmatprep.subr.mxu0 0.0
        %584 = vmatpush1.msra.mxu0 0.0
        %585 = vmatprep.subr.mxu0 0.0
        %586 = vmatpush1.msra.mxu0 0.0
        %587 = vmatprep.subr.mxu0 0.0
        %588 = vmatpush1.msra.mxu0 0.0
        %589 = vmatprep.subr.mxu0 0.0
        %590 = vmatpush1.msra.mxu0 0.0
        %591 = vmatprep.subr.mxu0 0.0
        %592 = vmatpush1.msra.mxu0 0.0
        %593 = vmatprep.subr.mxu0 0.0
        %594 = vmatpush1.msra.mxu0 0.0
        %595 = vmatprep.subr.mxu0 0.0
        %596 = vmatpush1.msra.mxu0 0.0
        %597 = vmatprep.subr.mxu0 0.0
        %598 = vmatpush1.msra.mxu0 0.0
        %599 = vmatprep.subr.mxu0 0.0
        %600 = vmatpush1.msra.mxu0 0.0
        %601 = vmatprep.subr.mxu0 0.0
        %602 = vmatpush1.msra.mxu0 0.0
        %603 = vmatprep.subr.mxu0 0.0
        %604 = vmatpush1.msra.mxu0 0.0
        %605 = vmatprep.subr.mxu0 0.0
        %606 = vmatpush1.msra.mxu0 0.0
        %607 = vmatprep.subr.mxu0 0.0
        %608 = vmatpush1.msra.mxu0 0.0
        %609 = vmatprep.subr.mxu0 0.0
        %610 = vmatpush1.msra.mxu0 0.0
        %611 = vmatprep.subr.mxu0 0.0
        %612 = vmatpush1.msra.mxu0 0.0
        %613 = vmatprep.subr.mxu0 0.0
        %614 = vmatpush1.msra.mxu0 0.0
        %615 = vmatprep.subr.mxu0 0.0
        %616 = vmatpush1.msra.mxu0 0.0
        %617 = vmatprep.subr.mxu0 0.0
        %618 = vmatpush1.msra.mxu0 0.0
        %619 = vmatprep.subr.mxu0 0.0
        %620 = vmatpush1.msra.mxu0 0.0
        %621 = vmatprep.subr.mxu0 0.0
        %622 = vmatpush1.msra.mxu0 0.0
        %623 = vmatprep.subr.mxu0 0.0
        %624 = vmatpush1.msra.mxu0 0.0
        %625 = vmatprep.subr.mxu0 0.0
        %626 = vmatpush1.msra.mxu0 0.0
        %627 = vmatprep.subr.mxu0 0.0
        %628 = vmatpush1.msra.mxu0 0.0
        %629 = vmatprep.subr.mxu0 0.0
        %630 = vmatpush1.msra.mxu0 0.0
        %631 = vmatprep.subr.mxu0 0.0
        %632 = vmatpush1.msra.mxu0 0.0
        %633 = vmatprep.mubr.f32.mxu0 0.0
        %v634 = vand.u32 %v218, 4294901760
        %635 = vmatmul.mubr.f32.gmra.mrb[0].mxu0 %v634
        %v636 = vpop.f32.mrb[0].mxu0
        %v637 = vadd.f32 %v552, %v636
        %v638 = vpop.f32.mrb[0].mxu0
        %639 = vmatprep.mubr.f32.mxu0 0.0
        %v640 = vand.u32 %v221, 4294901760
        %641 = vmatmul.mubr.f32.gmra.mrb[0].mxu0 %v640
        %v642 = vpop.f32.mrb[0].mxu0
        %v643 = vadd.f32 %v560, %v642
        %v644 = vpop.f32.mrb[0].mxu0
        %645 = vdwg.mxu0
        %646 = vmatprep.subr.mxu0 0.0
        %v647 = vand.u32 %v212, 4294901760
        %648 = vmatpush1.msra.mxu0 %v647
        %649 = vmatprep.subr.mxu0 0.0
        %v650 = vand.u32 %v213, 4294901760
        %651 = vmatpush1.msra.mxu0 %v650
        %652 = vmatprep.subr.mxu0 0.0
        %653 = vmatpush1.msra.mxu0 0.0
        %654 = vmatprep.subr.mxu0 0.0
        %655 = vmatpush1.msra.mxu0 0.0
        %656 = vmatprep.subr.mxu0 0.0
        %657 = vmatpush1.msra.mxu0 0.0
        %658 = vmatprep.subr.mxu0 0.0
        %659 = vmatpush1.msra.mxu0 0.0
        %660 = vmatprep.subr.mxu0 0.0
        %661 = vmatpush1.msra.mxu0 0.0
        %662 = vmatprep.subr.mxu0 0.0
        %663 = vmatpush1.msra.mxu0 0.0
        %664 = vmatprep.subr.mxu0 0.0
        %665 = vmatpush1.msra.mxu0 0.0
        %666 = vmatprep.subr.mxu0 0.0
        %667 = vmatpush1.msra.mxu0 0.0
        %668 = vmatprep.subr.mxu0 0.0
        %669 = vmatpush1.msra.mxu0 0.0
        %670 = vmatprep.subr.mxu0 0.0
        %671 = vmatpush1.msra.mxu0 0.0
        %672 = vmatprep.subr.mxu0 0.0
        %673 = vmatpush1.msra.mxu0 0.0
        %674 = vmatprep.subr.mxu0 0.0
        %675 = vmatpush1.msra.mxu0 0.0
        %676 = vmatprep.subr.mxu0 0.0
        %677 = vmatpush1.msra.mxu0 0.0
        %678 = vmatprep.subr.mxu0 0.0
        %679 = vmatpush1.msra.mxu0 0.0
        %680 = vmatprep.subr.mxu0 0.0
        %681 = vmatpush1.msra.mxu0 0.0
        %682 = vmatprep.subr.mxu0 0.0
        %683 = vmatpush1.msra.mxu0 0.0
        %684 = vmatprep.subr.mxu0 0.0
        %685 = vmatpush1.msra.mxu0 0.0
        %686 = vmatprep.subr.mxu0 0.0
        %687 = vmatpush1.msra.mxu0 0.0
        %688 = vmatprep.subr.mxu0 0.0
        %689 = vmatpush1.msra.mxu0 0.0
        %690 = vmatprep.subr.mxu0 0.0
        %691 = vmatpush1.msra.mxu0 0.0
        %692 = vmatprep.subr.mxu0 0.0
        %693 = vmatpush1.msra.mxu0 0.0
        %694 = vmatprep.subr.mxu0 0.0
        %695 = vmatpush1.msra.mxu0 0.0
        %696 = vmatprep.subr.mxu0 0.0
        %697 = vmatpush1.msra.mxu0 0.0
        %698 = vmatprep.subr.mxu0 0.0
        %699 = vmatpush1.msra.mxu0 0.0
        %700 = vmatprep.subr.mxu0 0.0
        %701 = vmatpush1.msra.mxu0 0.0
        %702 = vmatprep.subr.mxu0 0.0
        %703 = vmatpush1.msra.mxu0 0.0
        %704 = vmatprep.subr.mxu0 0.0
        %705 = vmatpush1.msra.mxu0 0.0
        %706 = vmatprep.subr.mxu0 0.0
        %707 = vmatpush1.msra.mxu0 0.0
        %708 = vmatprep.subr.mxu0 0.0
        %709 = vmatpush1.msra.mxu0 0.0
        %710 = vmatprep.subr.mxu0 0.0
        %711 = vmatpush1.msra.mxu0 0.0
        %712 = vmatprep.mubr.f32.mxu0 0.0
        %v713 = vand.u32 %v218, 4294901760
        %714 = vmatmul.mubr.f32.gmra.mrb[0].mxu0 %v713
        %v715 = vpop.f32.mrb[0].mxu0
        %v716 = vadd.f32 %v637, %v715
        %v717 = vpop.f32.mrb[0].mxu0
        %718 = vmatprep.mubr.f32.mxu0 0.0
        %v719 = vand.u32 %v221, 4294901760
        %720 = vmatmul.mubr.f32.gmra.mrb[0].mxu0 %v719
        %v721 = vpop.f32.mrb[0].mxu0
        %v722 = vadd.f32 %v643, %v721
        %v723 = vpop.f32.mrb[0].mxu0
        %724 = vdwg.mxu0
        %vm725 = vcmask 261120
        %726 = vst.msk [vmem:[%s210] sm:$0xff] %vm725, %v716
        %727 = vst.msk [vmem:[%s210 + $0x8] sm:$0xff] %vm725, %v722
        %s728 = sand.u32 %s105, 1
        %s729 = scalar_lea.sflag [#allocation4], %s728
        %s730 = sand.u32 %s105, 1
        %s731 = smul.addr %s730, 16
        %s732 = scalar_lea.vmem [#allocation7], %s731
        // Predicated region
        $region37: #{tpu_custom_call.1} parent=27 // pred_check
          %p733 = pneg %p115
        $region38: #{tpu_custom_call.1} parent=27 // pred_check_branch
          %735 = sbr.rel (%p733) target = $region40
        $region39: #{tpu_custom_call.1} parent=27 // pred_region
          %s736 = smul.u32 2, %s27
          %s738 = ssub.s32 256, 256
          %739 = vsyncadd %s729, %s738
          %s740 = sadd.s32 %s26, %s736
          %s741 = smul.addr %s25, 2
          %s742 = sadd.s32 %s740, %s741
          %s743 = smul.addr %s742, 128
          %s744 = scalar_lea.hbm %s2, %s743
          %s745 = sshll.u32 %s732, 4
          %s746 = int_to_ptr.vmem [resolvable:$true] %s745
          %751 = dma.vmem_to_hbm [thread:$0]  %s746, 256, %s744, %s729, 128, 128, 8
        $region40: #{tpu_custom_call.1} parent=27 // pred_fallthru
          _
      $region28: #{tpu_custom_call.1} parent=5 // pred_fallthru
        _
      %p752 = scmp.le.s32.totalorder 2, %s15
      // Predicated region
      $region41: #{tpu_custom_call.1} parent=5 // pred_check
        %p753 = pneg %p752
      $region42: #{tpu_custom_call.1} parent=5 // pred_check_branch
        %755 = sbr.rel (%p753) target = $region44
      $region43: #{tpu_custom_call.1} parent=5 // pred_region
        %s756 = ssub.s32 %s15, 2
        // Predicated region
        $region45: #{tpu_custom_call.1} parent=43 // pred_check
          %p757 = pneg %p121
        $region46: #{tpu_custom_call.1} parent=43 // pred_check_branch
          %759 = sbr.rel (%p757) target = $region48
        $region47: #{tpu_custom_call.1} parent=43 // pred_region
          %s760 = sand.u32 %s106, 1
          %s761 = scalar_lea.sflag [#allocation4], %s760
          %s762 = sand.u32 %s106, 1
          %s763 = smul.addr %s762, 16
          %s764 = scalar_lea.vmem [#allocation7], %s763
          %765 = dma.done %s761, 256
        $region48: #{tpu_custom_call.1} parent=43 // pred_fallthru
          _
      $region44: #{tpu_custom_call.1} parent=5 // pred_fallthru
        _
    $region6: #{tpu_custom_call.1} parent=1 // loop_footer
      %s19 = sadd.s32 1, %s15
    $region7: #{tpu_custom_call.1} parent=1 // loop_footer_branch
      %14 = sbr.rel target = $region3
    $region8: #{tpu_custom_call.1} parent=1 // loop_exit
      _
    %766 = vsyncpa [#allocation3], 1
    %s767 = scalar_lea.sflag [#allocation3], 1
    %768 = vsyncpa %s767, 1
    %769 = vsyncpa [#allocation6], 1
    %s770 = scalar_lea.sflag [#allocation6], 1
    %771 = vsyncpa %s770, 1
    %772 = vsyncpa [#allocation4], 1
    %s773 = scalar_lea.sflag [#allocation4], 1
    %774 = vsyncpa %s773, 1

</llo_original>
